<compile_context>
chip_gen: v7x
topology: tpu7x:2x2x1
jax: 0.10.0
libtpu: 0.0.40
codegen_flags: <defaults>
</compile_context>

<pallas_src>
import functools

import jax
import jax.numpy as jnp
from jax import lax
from jax.experimental import pallas as pl
from jax.experimental.pallas import tpu as pltpu


def _round_down_128(x):
    return max(128, (x // 128) * 128)


def _tpu_params():
    """(physical VMEM bytes, TensorCores per chip) — generation aware, safe fallbacks."""
    vmem_cap = None
    num_cores = None
    try:
        info = pltpu.get_tpu_info()
        cap = int(getattr(info, "vmem_capacity_bytes", 0) or 0)
        if cap > 0:
            vmem_cap = cap
        for attr in ("num_tensorcores", "tensorcores_per_chip", "num_cores",
                     "cores_per_chip"):
            v = getattr(info, attr, None)
            if v:
                num_cores = int(v)
                break
    except Exception:  # best-effort hardware query
        pass
    kind = ""
    try:
        kind = jax.devices()[0].device_kind.lower()
    except Exception:
        pass
    if vmem_cap is None:
        vmem_cap = (64 << 20) if "v7" in kind else (128 << 20)
    if num_cores is None:
        num_cores = 2 if "v7" in kind else 1
    return int(vmem_cap), max(1, min(int(num_cores), 2))


def _choose_tk(M, N, itemsize, tile_budget, ncores):
    """Lane-tile size (multiple of 128, or the full M) for streaming F as (N, tk) blocks."""
    row_bytes = max(1, N * itemsize)
    acc_bytes = 2 * N * N * 4 + (2 << 20)        # double-buffered f32 gram block + slack
    # Largest tk that (conservatively, 3 streamed buffers) fits the budget.
    tk_budget = _round_down_128(max(0, tile_budget - acc_bytes) // (3 * row_bytes))
    # Target ~4 MiB per streamed block; never below 2048 lanes unless forced.
    tk_target = max(2048, _round_down_128((4 << 20) // row_bytes))
    tk = min(tk_budget, tk_target)
    # Keep >= 2 steps per core when there is enough data, so DMA overlaps
    # compute and (on v7x) both TensorCores get work.
    if M >= 2 * ncores * 256:
        tk = min(tk, _round_down_128(M // (2 * ncores)))
    tk = max(128, tk)
    if tk >= M:
        return M                                  # full-dim block is always legal
    return tk


def _partial_gram_kernel(M, tk, ktc, needs_mask, f_ref, g_ref):
    """g[c] += F_tile @ F_tile.T with ragged/duplicate tail lanes zero-masked."""
    k = pl.program_id(1)

    @pl.when(k == 0)
    def _init():
        g_ref[...] = jnp.zeros_like(g_ref)

    f = f_ref[...]                                # (N, tk), caller dtype (bf16/f32)
    if needs_mask:
        base = (pl.program_id(0) * ktc + k) * tk
        col = base + lax.broadcasted_iota(jnp.int32, f.shape, 1)
        f = jnp.where(col < M, f, jnp.zeros_like(f))
    # NT matmul: contract the lane dim of both operands (no transpose copy).
    # TODO(synk): confirm in the bundle dump that no vxpose is emitted for this form.
    g_ref[0] += lax.dot_general(
        f, f,
        dimension_numbers=(((1,), (1,)), ((), ())),
        preferred_element_type=jnp.float32)


def _partial_grams(x):
    """Streams F = x.reshape(N, M) once through the MXU; returns per-core
    partial (unnormalized) gram matrices of shape (C, N, N) in f32."""
    a, b, c, d = x.shape
    N, M = a * b, c * d
    f = x.reshape(N, M)                           # keep the caller's dtype
    itemsize = jnp.dtype(f.dtype).itemsize

    vmem_cap, ncores = _tpu_params()
    tile_budget = vmem_cap * 3 // 4               # ~48 MiB on v7x, ~96 MiB on v5e/v6e
    tk = _choose_tk(M, N, itemsize, tile_budget, ncores)
    kt = -(-M // tk)                              # number of real lane tiles
    C = ncores if kt >= 2 else 1                  # split the reduction across TCs (v7x)
    ktc = -(-kt // C)                             # k-steps per core
    needs_mask = (M % tk != 0) or (C * ktc != kt)

    if C * ktc == kt:
        feat_index = lambda ci, kk: (0, ci * ktc + kk)
    else:
        # Clamp duplicate trailing block indices into range; the kernel masks
        # their contribution to zero.
        feat_index = lambda ci, kk: (0, jnp.minimum(ci * ktc + kk, kt - 1))

    vmem_need = 2 * N * tk * itemsize + 2 * N * N * 4 + (4 << 20)
    vmem_limit = int(min(max(vmem_need, 16 << 20), vmem_cap - (8 << 20)))

    partials = pl.pallas_call(
        functools.partial(_partial_gram_kernel, M, tk, ktc, needs_mask),
        out_shape=jax.ShapeDtypeStruct((C, N, N), jnp.float32),
        grid_spec=pltpu.PrefetchScalarGridSpec(
            num_scalar_prefetch=0,
            grid=(C, ktc),
            in_specs=[pl.BlockSpec((N, tk), feat_index)],
            out_specs=pl.BlockSpec((1, N, N), lambda ci, kk: (ci, 0, 0)),
        ),
        compiler_params=pltpu.CompilerParams(
            dimension_semantics=("parallel", "arbitrary"),
            vmem_limit_bytes=vmem_limit),
    )(f)
    inv_denom = 1.0 / float(a * b * c * d)
    return partials, inv_denom


def gram_matrix(x):
    """Pallas-computed gram matrix of an NCHW tensor: (F @ F.T) / (a*b*c*d)."""
    partials, inv_denom = _partial_grams(x)
    # Tiny (C, N, N) -> (N, N) combine + normalize in plain XLA (negligible).
    return jnp.sum(partials, axis=0) * inv_denom


class StyleLoss:
    """JAX/Pallas port of the PyTorch StyleLoss module (forward semantics)."""

    def __init__(self, target_feature):
        self.target = lax.stop_gradient(gram_matrix(target_feature))  # .detach()
        self.loss = None

    def __call__(self, x):
        G = gram_matrix(x)
        # TODO(synk): storing the loss on self.loss mirrors the PyTorch module's
        # side-effect API but is not jit/grad-friendly.
        self.loss = jnp.mean((G - self.target) ** 2)
        return x                                   # forward returns its input


if __name__ == "__main__":
    key = jax.random.PRNGKey(0)
    k1, k2 = jax.random.split(key)
    # NCHW, batch=2, channels=4, spatial=16 (N = 8, M = 256).
    target_feature = jax.random.normal(k1, (2, 4, 16, 16), jnp.float32)
    x = jax.random.normal(k2, (2, 4, 16, 16), jnp.float32)

    module = StyleLoss(target_feature)
    out = module(x)
    out = jax.block_until_ready(out)
    loss = jax.block_until_ready(module.loss)

    # Pure-JAX reference of the module's semantics.
    def ref_gram(t):
        a, b, c, d = t.shape
        feat = t.reshape(a * b, c * d).astype(jnp.float32)
        g = jnp.dot(feat, feat.T, precision=lax.Precision.HIGHEST)
        return g / (a * b * c * d)

    ref_loss = jnp.mean((ref_gram(x) - ref_gram(target_feature)) ** 2)
    assert out.shape == x.shape and bool(jnp.allclose(out, x))
    assert bool(jnp.allclose(module.target, ref_gram(target_feature),
                             rtol=1e-4, atol=1e-5))
    assert bool(jnp.allclose(loss, ref_loss, rtol=1e-4, atol=1e-5))

    print("KERNEL_OK")
</pallas_src>

<mosaic_0001>
module attributes {stable_mosaic.version = 11 : i64} {
  func.func @_partial_gram_kernel(%arg0: i32, %arg1: i32, %arg2: memref<8x256xf32, #tpu.memory_space<vmem>>, %arg3: memref<1x8x8xf32, #tpu.memory_space<vmem>>) attributes {dimension_semantics = [#tpu.dimension_semantics<parallel>, #tpu.dimension_semantics<arbitrary>], iteration_bounds = array<i64: 1, 1>, scalar_prefetch = 0 : i64, scratch_operands = 0 : i64, tpu.core_type = #tpu.core_type<tc>, window_params = [{transform_indices = @transform_0, window_bounds = array<i64: 8, 256>}, {transform_indices = @transform_1, window_bounds = array<i64: 1, 8, 8>}]} {
    %c0_i32 = arith.constant 0 : i32
    %0 = arith.cmpi eq, %arg1, %c0_i32 : i32
    %1 = arith.extui %0 : i1 to i32
    %c0_i32_0 = arith.constant 0 : i32
    %2 = arith.cmpi ne, %1, %c0_i32_0 : i32
    scf.if %2 {
      %cst_8 = arith.constant 0.000000e+00 : f32
      %11 = vector.broadcast %cst_8 : f32 to vector<1x8x8xf32>
      %c0_9 = arith.constant 0 : index
      %c0_10 = arith.constant 0 : index
      %c0_11 = arith.constant 0 : index
      %12 = vector.load %arg3[%c0_9, %c0_10, %c0_11] : memref<1x8x8xf32, #tpu.memory_space<vmem>>, vector<1x8x8xf32>
      tpu.vector_store %arg3[%c0_9, %c0_10, %c0_11], %11 {strides = array<i32>} : memref<1x8x8xf32, #tpu.memory_space<vmem>>, vector<1x8x8xf32>,
    } else {
    }
    %c0 = arith.constant 0 : index
    %c0_1 = arith.constant 0 : index
    %3 = vector.load %arg2[%c0, %c0_1] : memref<8x256xf32, #tpu.memory_space<vmem>>, vector<8x256xf32>
    %c0_2 = arith.constant 0 : index
    %c0_3 = arith.constant 0 : index
    %c0_4 = arith.constant 0 : index
    %4 = vector.load %arg3[%c0_2, %c0_3, %c0_4] : memref<1x8x8xf32, #tpu.memory_space<vmem>>, vector<1x8x8xf32>
    %5 = vector.shape_cast %4 : vector<1x8x8xf32> to vector<8x8xf32>
    %cst = arith.constant dense<0.000000e+00> : vector<8x8xf32>
    %6 = tpu.matmul %3, %3, %cst {dimension_numbers = #tpu.dot_dimension_numbers<[1], [1], [0], [0], [0, 0, 1, 0], [], []>} : vector<8x256xf32>, vector<8x256xf32>, vector<8x8xf32> -> vector<8x8xf32>
    %7 = arith.addf %5, %6 : vector<8x8xf32>
    %c0_5 = arith.constant 0 : index
    %c0_6 = arith.constant 0 : index
    %c0_7 = arith.constant 0 : index
    %8 = vector.load %arg3[%c0_5, %c0_6, %c0_7] : memref<1x8x8xf32, #tpu.memory_space<vmem>>, vector<1x8x8xf32>
    %9 = vector.shape_cast %8 : vector<1x8x8xf32> to vector<8x8xf32>
    %10 = vector.shape_cast %7 : vector<8x8xf32> to vector<1x8x8xf32>
    tpu.vector_store %arg3[%c0_5, %c0_6, %c0_7], %10 {strides = array<i32>} : memref<1x8x8xf32, #tpu.memory_space<vmem>>, vector<1x8x8xf32>,
    return
  }
  func.func @transform_0(%arg0: i32, %arg1: i32) -> (i32, i32) {
    %c1_i32 = arith.constant 1 : i32
    %0 = arith.muli %arg0, %c1_i32 : i32
    %1 = arith.addi %0, %arg1 : i32
    %c0_i32 = arith.constant 0 : i32
    %c0_i32_0 = arith.constant 0 : i32
    return %c0_i32, %1 : i32, i32
  }
  func.func @transform_1(%arg0: i32, %arg1: i32) -> (i32, i32, i32) {
    %c0_i32 = arith.constant 0 : i32
    %c0_i32_0 = arith.constant 0 : i32
    %c0_i32_1 = arith.constant 0 : i32
    return %arg0, %c0_i32, %c0_i32_0 : i32, i32, i32
  }
}

</mosaic_0001>

<llo_original>
// kernel: tpu_custom_call.1
$region0: #{tpu_custom_call.1}
  #allocation0 [shape = 'u32[]', space=smem, size = 0x4, offset = 0x4, fixed_abs, tag = 'smem constant byte address 0x4 - core index']
  #allocation1 [shape = 'u32[144,128]{1,0:T(1,128)}', space=vmem, size = 0x12000, scoped, tag = 'internal scratch']
  %s0 = inlined_call_operand.hbm [shape: f32[8,256], index: 0, kind: input, shape index: {}]
  %s1 = inlined_call_operand.hbm [shape: f32[1,8,8], index: 1, kind: output, shape index: {}]
  %s2 = sld [smem:[#allocation0]]
  $region22: #{tpu_custom_call.1} parent=0
    _
  %s4 = ssub.s32 1, %s2
  %s5 = scalar_select 0, %s4, %s2
  $region1: #{tpu_custom_call.1} parent=0
    #allocation2 [shape = 'u8[8192]{0}', space=vmem, size = 0x2000, scoped, tag = 'input window, operand 0, single buffered']
    #allocation3 [shape = 's32[1]{0}', space=sflag, size = 0x4, scoped, tag = 'scoped memory for tpu_custom_call.1']
    #allocation4 [shape = 's32[1]{0}', space=sflag, size = 0x4, scoped, tag = 'scoped memory for tpu_custom_call.1']
    #allocation5 [shape = 'u8[4096]{0}', space=vmem, size = 0x1000, scoped, tag = 'output window, operand 0, single buffered']
    %6 = vsyncpa [#allocation3], 0
    %7 = vsyncpa [#allocation4], 0
    // Predicated region
    $region2: #{tpu_custom_call.1} parent=1 // pred_check
      _
    $region3: #{tpu_custom_call.1} parent=1 // pred_check_branch
      %9 = sbr.rel (0) target = $region5
    $region4: #{tpu_custom_call.1} parent=1 // pred_region
      %s10 = sadd.s32 0, 0
      %s11 = smul.u32 2, %s10
      %s13 = ssub.s32 256, 256
      %14 = vsyncadd [#allocation3], %s13
      %s15 = smul.addr %s11, 128
      %s16 = scalar_lea.hbm %s0, %s15
      %s18 = sshll.u32 [#allocation2], 4
      %s19 = int_to_ptr.vmem [resolvable:$true] %s18
      %21 = dma.hbm_to_vmem [thread:$0]  %s16, 256, %s19, [#allocation3]
    $region5: #{tpu_custom_call.1} parent=1 // pred_fallthru
      _
    // Predicated region
    $region6: #{tpu_custom_call.1} parent=1 // pred_check
      _
    $region7: #{tpu_custom_call.1} parent=1 // pred_check_branch
      %23 = sbr.rel (0) target = $region9
    $region8: #{tpu_custom_call.1} parent=1 // pred_region
      %24 = dma.done [#allocation3], 256
    $region9: #{tpu_custom_call.1} parent=1 // pred_fallthru
      _
    %s25 = sadd.s32 0, 0
    %s26 = smul.u32 2, %s25
    %p27 = scmp.eq.s32.totalorder 0, 0
    // Predicated region
    $region10: #{tpu_custom_call.1} parent=1 // pred_check
      %p28 = pneg %p27
    $region11: #{tpu_custom_call.1} parent=1 // pred_check_branch
      %30 = sbr.rel (%p28) target = $region13
    $region12: #{tpu_custom_call.1} parent=1 // pred_region
      %vm31 = vcmask 64512
      %32 = vst.msk [vmem:[#allocation5] sm:$0xff] %vm31, 0.0
    $region13: #{tpu_custom_call.1} parent=1 // pred_fallthru
      _
    %v33 = vld [vmem:[#allocation2] sm:$0xff]
    %v34 = vld [vmem:[#allocation2 + $0x8] sm:$0xff]
    %v35 = vld [vmem:[#allocation5] sm:$0xff]
    %36 = vmatprep.subr.mxu0 %v34
    %37 = vmatpush1.xpose.msra.mxu0 %v33
    %38 = vmatprep.subr.mxu0 0.0
    %39 = vmatpush1.xpose.msra.mxu0 0.0
    %40 = vmatprep.subr.mxu0 0.0
    %41 = vmatpush1.xpose.msra.mxu0 0.0
    %42 = vmatprep.subr.mxu0 0.0
    %43 = vmatpush1.xpose.msra.mxu0 0.0
    %44 = vmatprep.subr.mxu0 0.0
    %45 = vmatpush1.xpose.msra.mxu0 0.0
    %46 = vmatprep.subr.mxu0 0.0
    %47 = vmatpush1.xpose.msra.mxu0 0.0
    %48 = vmatprep.subr.mxu0 0.0
    %49 = vmatpush1.xpose.msra.mxu0 0.0
    %50 = vmatprep.subr.mxu0 0.0
    %51 = vmatpush1.xpose.msra.mxu0 0.0
    %52 = vmatprep.subr.mxu0 0.0
    %53 = vmatpush1.xpose.msra.mxu0 0.0
    %54 = vmatprep.subr.mxu0 0.0
    %55 = vmatpush1.xpose.msra.mxu0 0.0
    %56 = vmatprep.subr.mxu0 0.0
    %57 = vmatpush1.xpose.msra.mxu0 0.0
    %58 = vmatprep.subr.mxu0 0.0
    %59 = vmatpush1.xpose.msra.mxu0 0.0
    %60 = vmatprep.subr.mxu0 0.0
    %61 = vmatpush1.xpose.msra.mxu0 0.0
    %62 = vmatprep.subr.mxu0 0.0
    %63 = vmatpush1.xpose.msra.mxu0 0.0
    %64 = vmatprep.subr.mxu0 0.0
    %65 = vmatpush1.xpose.msra.mxu0 0.0
    %66 = vmatprep.subr.mxu0 0.0
    %67 = vmatpush1.xpose.msra.mxu0 0.0
    %68 = vmatprep.subr.mxu0 0.0
    %69 = vmatpush1.xpose.msra.mxu0 0.0
    %70 = vmatprep.subr.mxu0 0.0
    %71 = vmatpush1.xpose.msra.mxu0 0.0
    %72 = vmatprep.subr.mxu0 0.0
    %73 = vmatpush1.xpose.msra.mxu0 0.0
    %74 = vmatprep.subr.mxu0 0.0
    %75 = vmatpush1.xpose.msra.mxu0 0.0
    %76 = vmatprep.subr.mxu0 0.0
    %77 = vmatpush1.xpose.msra.mxu0 0.0
    %78 = vmatprep.subr.mxu0 0.0
    %79 = vmatpush1.xpose.msra.mxu0 0.0
    %80 = vmatprep.subr.mxu0 0.0
    %81 = vmatpush1.xpose.msra.mxu0 0.0
    %82 = vmatprep.subr.mxu0 0.0
    %83 = vmatpush1.xpose.msra.mxu0 0.0
    %84 = vmatprep.subr.mxu0 0.0
    %85 = vmatpush1.xpose.msra.mxu0 0.0
    %86 = vmatprep.subr.mxu0 0.0
    %87 = vmatpush1.xpose.msra.mxu0 0.0
    %88 = vmatprep.subr.mxu0 0.0
    %89 = vmatpush1.xpose.msra.mxu0 0.0
    %90 = vmatprep.subr.mxu0 0.0
    %91 = vmatpush1.xpose.msra.mxu0 0.0
    %92 = vmatprep.subr.mxu0 0.0
    %93 = vmatpush1.xpose.msra.mxu0 0.0
    %94 = vmatprep.subr.mxu0 0.0
    %95 = vmatpush1.xpose.msra.mxu0 0.0
    %96 = vmatprep.subr.mxu0 0.0
    %97 = vmatpush1.xpose.msra.mxu0 0.0
    %98 = vmatprep.subr.mxu0 0.0
    %99 = vmatpush1.xpose.msra.mxu0 0.0
    %100 = vmatprep.mubr.f32.mxu0 %v34
    %101 = vmatmul.mubr.f32.gmra.mrb[0].mxu0 %v33
    %v102 = vpop.f32.mrb[0].mxu0
    %v103 = vadd.f32 0.0, %v102
    %v104 = vpop.f32.mrb[0].mxu0
    %105 = vdwg.mxu0
    %v106 = vadd.f32 %v35, %v103
    %vm107 = vcmask 64512
    %108 = vst.msk [vmem:[#allocation5] sm:$0xff] %vm107, %v106
    // Predicated region
    $region14: #{tpu_custom_call.1} parent=1 // pred_check
      _
    $region15: #{tpu_custom_call.1} parent=1 // pred_check_branch
      %110 = sbr.rel (0) target = $region17
    $region16: #{tpu_custom_call.1} parent=1 // pred_region
      %s112 = ssub.s32 128, 128
      %113 = vsyncadd [#allocation4], %s112
      %s115 = sshll.u32 [#allocation5], 4
      %s116 = int_to_ptr.vmem [resolvable:$true] %s115
      %118 = dma.vmem_to_hbm [thread:$0]  %s116, 128, %s1, [#allocation4]
    $region17: #{tpu_custom_call.1} parent=1 // pred_fallthru
      _
    // Predicated region
    $region18: #{tpu_custom_call.1} parent=1 // pred_check
      _
    $region19: #{tpu_custom_call.1} parent=1 // pred_check_branch
      %120 = sbr.rel (0) target = $region21
    $region20: #{tpu_custom_call.1} parent=1 // pred_region
      %121 = dma.done [#allocation4], 128
    $region21: #{tpu_custom_call.1} parent=1 // pred_fallthru
      _
    %122 = vsyncpa [#allocation3], 1
    %123 = vsyncpa [#allocation4], 1

</llo_original>
